<compile_context>
chip_gen: v5e
topology: v5e:2x2
jax: 0.10.0
libtpu: 0.0.40
codegen_flags: <defaults>
</compile_context>

<pallas_src>
import functools

import jax
import jax.numpy as jnp
from jax.experimental import pallas as pl
from jax.experimental.pallas import tpu as pltpu


# ---------------------------------------------------------------------------
# helpers
# ---------------------------------------------------------------------------

def _vmem_budget_bytes():
    """Usable VMEM budget in bytes (generation aware, with a safe fallback)."""
    try:
        cap = int(pltpu.get_tpu_info().vmem_capacity_bytes)
    except Exception:
        cap = 64 << 20  # conservative (v7x-sized) fallback
    # Leave headroom for compiler temps / metadata.
    return max(16 << 20, int(cap * 0.6))


def _round_up(v, m):
    return ((v + m - 1) // m) * m


# ---------------------------------------------------------------------------
# fused single-pass kernel: pool + gate + scale (x read once, written once)
# ---------------------------------------------------------------------------

def _cse_fused_kernel(x_ref, w1t_ref, w2t_ref, o_ref, *, inv_hw, use_mxu):
    # x_ref/o_ref: (Nb, C, HWp);  w1t_ref: (C, Cr);  w2t_ref: (Cr, C)
    # Global average pool: f32 accumulation, no full-block f32 copy of x.
    avg = jnp.sum(x_ref[...], axis=2, dtype=jnp.float32) * inv_hw        # (Nb, C)

    w1t = w1t_ref[...].astype(jnp.float32)                                # (C, Cr)
    w2t = w2t_ref[...].astype(jnp.float32)                                # (Cr, C)

    if use_mxu:
        # Large C: drive the MXU; weights pre-transposed on host so the
        # contraction axis needs no in-kernel transpose.
        h = jnp.maximum(jnp.dot(avg, w1t, preferred_element_type=jnp.float32), 0.0)
        y = jax.nn.sigmoid(jnp.dot(h, w2t, preferred_element_type=jnp.float32))
    else:
        # Tiny C: broadcast + reduce on the VPU.
        h = jnp.maximum(jnp.sum(avg[:, :, None] * w1t[None, :, :], axis=1), 0.0)   # (Nb, Cr)
        y = jax.nn.sigmoid(jnp.sum(h[:, :, None] * w2t[None, :, :], axis=1))       # (Nb, C)

    # Channel gate broadcast over spatial; multiply at native dtype.
    o_ref[...] = x_ref[...] * y.astype(o_ref.dtype)[:, :, None]


# ---------------------------------------------------------------------------
# tiled streaming scale kernel (fallback when the fused block cannot fit VMEM)
# ---------------------------------------------------------------------------

def _cse_scale_kernel(y_ref, x_ref, o_ref):
    # y_ref: (1, C, 1) f32 gate;  x_ref/o_ref: (1, C, T_HW)
    o_ref[...] = x_ref[...] * y_ref[...].astype(o_ref.dtype)


# ---------------------------------------------------------------------------
# wrapper
# ---------------------------------------------------------------------------

def cse_forward(x, w1, w2, *, force_tiled=False):
    """cSE forward.  x: (N, C, H, W);  w1: (C//r, C);  w2: (C, C//r)."""
    N, C, H, W = x.shape
    Cr = w1.shape[0]
    HW = H * W
    HWp = _round_up(HW, 128)                 # lane-dense last axis
    itemsize = jnp.dtype(x.dtype).itemsize

    x3 = x.reshape(N, C, HW)
    if HWp != HW:
        x3 = jnp.pad(x3, ((0, 0), (0, 0), (0, HWp - HW)))

    # Pre-transpose weights on the host (contraction axis laid out for dot).
    w1t = jnp.transpose(w1)                  # (C, Cr)
    w2t = jnp.transpose(w2)                  # (Cr, C)

    budget = _vmem_budget_bytes()
    per_batch_bytes = C * HWp * itemsize
    # ~5x: double-buffered input + double-buffered output + small temps.
    fits_fused = 5 * per_batch_bytes <= budget

    if fits_fused and not force_tiled:
        # ---- single-pass fused path (HBM optimal: x read once, written once)
        nb = min(N, max(1, budget // (5 * per_batch_bytes)))
        while nb > 1 and N % nb != 0:
            nb -= 1

        kernel = functools.partial(
            _cse_fused_kernel, inv_hw=1.0 / HW, use_mxu=(C >= 256))

        out3 = pl.pallas_call(
            kernel,
            out_shape=jax.ShapeDtypeStruct((N, C, HWp), x.dtype),
            grid_spec=pltpu.PrefetchScalarGridSpec(
                num_scalar_prefetch=0,
                grid=(N // nb,),
                in_specs=[
                    pl.BlockSpec((nb, C, HWp), lambda n: (n, 0, 0)),
                    pl.BlockSpec((C, Cr), lambda n: (0, 0)),
                    pl.BlockSpec((Cr, C), lambda n: (0, 0)),
                ],
                out_specs=pl.BlockSpec((nb, C, HWp), lambda n: (n, 0, 0)),
            ),
            compiler_params=pltpu.CompilerParams(
                dimension_semantics=("parallel",),
                vmem_limit_bytes=budget),
        )(x3, w1t, w2t)
    else:
        # ---- tiled two-pass fallback (large C*HW, e.g. v7x 64 MiB VMEM).
        # The gate is tiny -> compute it in plain XLA; the Pallas kernel is a
        # pure streaming channel-scale over lane-dense HW tiles.
        avg = jnp.mean(x, axis=(2, 3), dtype=jnp.float32)             # (N, C)
        h = jnp.maximum(jnp.dot(avg, w1t.astype(jnp.float32)), 0.0)   # (N, Cr)
        y = jax.nn.sigmoid(jnp.dot(h, w2t.astype(jnp.float32)))       # (N, C)
        y3 = y.reshape(N, C, 1)

        # HW tile: largest multiple of 128 that divides HWp and fits budget.
        # (If even C*128 overflows the budget, C would also need tiling; that
        #  regime is far beyond realistic cSE shapes.)
        n_lanes = HWp // 128
        t_hw = 128
        for k in range(1, n_lanes + 1):
            if n_lanes % k:
                continue
            t = HWp // k
            if 5 * C * t * itemsize <= budget:
                t_hw = t
                break

        out3 = pl.pallas_call(
            _cse_scale_kernel,
            out_shape=jax.ShapeDtypeStruct((N, C, HWp), x.dtype),
            grid_spec=pltpu.PrefetchScalarGridSpec(
                num_scalar_prefetch=0,
                grid=(N, HWp // t_hw),
                in_specs=[
                    pl.BlockSpec((1, C, 1), lambda n, t: (n, 0, 0)),
                    pl.BlockSpec((1, C, t_hw), lambda n, t: (n, 0, t)),
                ],
                out_specs=pl.BlockSpec((1, C, t_hw), lambda n, t: (n, 0, t)),
            ),
            compiler_params=pltpu.CompilerParams(
                dimension_semantics=("parallel", "parallel"),
                vmem_limit_bytes=budget),
        )(y3, x3)

    if HWp != HW:
        out3 = out3[:, :, :HW]
    return out3.reshape(N, C, H, W)


# ---------------------------------------------------------------------------
# reference + test
# ---------------------------------------------------------------------------

def _reference(x, w1, w2):
    # Pure-JAX reference matching the PyTorch module.
    avg = jnp.mean(x, axis=(2, 3))                       # (N, C)
    h = jnp.maximum(avg @ w1.T, 0.0)                     # (N, C//r)
    y = jax.nn.sigmoid(h @ w2.T)                         # (N, C)
    return x * y[:, :, None, None]


if __name__ == "__main__":
    N, C, H, W = 2, 4, 16, 16
    reduction = 2
    Cr = C // reduction

    key = jax.random.PRNGKey(0)
    kx, k1, k2 = jax.random.split(key, 3)
    x = jax.random.normal(kx, (N, C, H, W), dtype=jnp.float32)
    # Deterministic synthetic weights for the two bias-free 1x1 convs.
    w1 = 0.1 * jax.random.normal(k1, (Cr, C), dtype=jnp.float32)
    w2 = 0.1 * jax.random.normal(k2, (C, Cr), dtype=jnp.float32)

    ref = _reference(x, w1, w2)

    # Fast fused single-pass path (selected automatically at this shape).
    out = jax.block_until_ready(cse_forward(x, w1, w2))
    assert out.shape == (N, C, H, W)
    assert jnp.allclose(out, ref, atol=1e-5, rtol=1e-5), "fused path mismatch"

    # Also exercise the tiled two-pass fallback path (forced).
    out_tiled = jax.block_until_ready(cse_forward(x, w1, w2, force_tiled=True))
    assert jnp.allclose(out_tiled, ref, atol=1e-5, rtol=1e-5), "tiled path mismatch"

    print("KERNEL_OK")
</pallas_src>

<mosaic_0001>
module attributes {stable_mosaic.version = 11 : i64} {
  func.func @_cse_fused_kernel(%arg0: i32, %arg1: memref<2x4x256xf32, #tpu.memory_space<vmem>>, %arg2: memref<4x2xf32, #tpu.memory_space<vmem>>, %arg3: memref<2x4xf32, #tpu.memory_space<vmem>>, %arg4: memref<2x4x256xf32, #tpu.memory_space<vmem>>) attributes {dimension_semantics = [#tpu.dimension_semantics<parallel>], iteration_bounds = array<i64: 1>, scalar_prefetch = 0 : i64, scratch_operands = 0 : i64, tpu.core_type = #tpu.core_type<tc>, window_params = [{transform_indices = @transform_0, window_bounds = array<i64: 2, 4, 256>}, {pipeline_mode = #tpu.pipeline_mode<synchronous>, transform_indices = @transform_1, window_bounds = array<i64: 4, 2>}, {pipeline_mode = #tpu.pipeline_mode<synchronous>, transform_indices = @transform_2, window_bounds = array<i64: 2, 4>}, {transform_indices = @transform_3, window_bounds = array<i64: 2, 4, 256>}]} {
    %c0 = arith.constant 0 : index
    %c0_0 = arith.constant 0 : index
    %c0_1 = arith.constant 0 : index
    %0 = vector.load %arg1[%c0, %c0_0, %c0_1] : memref<2x4x256xf32, #tpu.memory_space<vmem>>, vector<2x4x256xf32>
    %cst = arith.constant dense<0.000000e+00> : vector<2x4xf32>
    %1 = vector.multi_reduction <add>, %0, %cst [2] : vector<2x4x256xf32> to vector<2x4xf32>
    %cst_2 = arith.constant 3.906250e-03 : f32
    %2 = vector.broadcast %cst_2 : f32 to vector<2x4xf32>
    %3 = arith.mulf %1, %2 : vector<2x4xf32>
    %c0_3 = arith.constant 0 : index
    %c0_4 = arith.constant 0 : index
    %4 = vector.load %arg2[%c0_3, %c0_4] : memref<4x2xf32, #tpu.memory_space<vmem>>, vector<4x2xf32>
    %c0_5 = arith.constant 0 : index
    %c0_6 = arith.constant 0 : index
    %5 = vector.load %arg3[%c0_5, %c0_6] : memref<2x4xf32, #tpu.memory_space<vmem>>, vector<2x4xf32>
    %6 = vector.shape_cast %3 : vector<2x4xf32> to vector<2x4x1xf32>
    %7 = vector.shape_cast %4 : vector<4x2xf32> to vector<1x4x2xf32>
    %8 = vector.broadcast %6 : vector<2x4x1xf32> to vector<2x4x2xf32>
    %9 = vector.broadcast %7 : vector<1x4x2xf32> to vector<2x4x2xf32>
    %10 = arith.mulf %8, %9 : vector<2x4x2xf32>
    %cst_7 = arith.constant dense<0.000000e+00> : vector<2x2xf32>
    %11 = vector.multi_reduction <add>, %10, %cst_7 [1] : vector<2x4x2xf32> to vector<2x2xf32>
    %cst_8 = arith.constant 0.000000e+00 : f32
    %12 = vector.broadcast %cst_8 : f32 to vector<2x2xf32>
    %13 = arith.maximumf %11, %12 : vector<2x2xf32>
    %14 = vector.shape_cast %13 : vector<2x2xf32> to vector<2x2x1xf32>
    %15 = vector.shape_cast %5 : vector<2x4xf32> to vector<1x2x4xf32>
    %16 = vector.broadcast %14 : vector<2x2x1xf32> to vector<2x2x4xf32>
    %17 = vector.broadcast %15 : vector<1x2x4xf32> to vector<2x2x4xf32>
    %18 = arith.mulf %16, %17 : vector<2x2x4xf32>
    %cst_9 = arith.constant dense<0.000000e+00> : vector<2x4xf32>
    %19 = vector.multi_reduction <add>, %18, %cst_9 [1] : vector<2x2x4xf32> to vector<2x4xf32>
    %20 = arith.negf %19 : vector<2x4xf32>
    %21 = math.exp %20 : vector<2x4xf32>
    %cst_10 = arith.constant 1.000000e+00 : f32
    %22 = vector.broadcast %cst_10 : f32 to vector<2x4xf32>
    %23 = arith.addf %22, %21 : vector<2x4xf32>
    %24 = arith.divf %22, %23 : vector<2x4xf32>
    %c0_11 = arith.constant 0 : index
    %c0_12 = arith.constant 0 : index
    %c0_13 = arith.constant 0 : index
    %25 = vector.load %arg1[%c0_11, %c0_12, %c0_13] : memref<2x4x256xf32, #tpu.memory_space<vmem>>, vector<2x4x256xf32>
    %26 = vector.shape_cast %24 : vector<2x4xf32> to vector<2x4x1xf32>
    %27 = vector.broadcast %26 : vector<2x4x1xf32> to vector<2x4x256xf32>
    %28 = arith.mulf %25, %27 : vector<2x4x256xf32>
    %c0_14 = arith.constant 0 : index
    %c0_15 = arith.constant 0 : index
    %c0_16 = arith.constant 0 : index
    %29 = vector.load %arg4[%c0_14, %c0_15, %c0_16] : memref<2x4x256xf32, #tpu.memory_space<vmem>>, vector<2x4x256xf32>
    tpu.vector_store %arg4[%c0_14, %c0_15, %c0_16], %28 {strides = array<i32>} : memref<2x4x256xf32, #tpu.memory_space<vmem>>, vector<2x4x256xf32>,
    return
  }
  func.func @transform_0(%arg0: i32) -> (i32, i32, i32) {
    %c0_i32 = arith.constant 0 : i32
    %c0_i32_0 = arith.constant 0 : i32
    %c0_i32_1 = arith.constant 0 : i32
    return %arg0, %c0_i32, %c0_i32_0 : i32, i32, i32
  }
  func.func @transform_1(%arg0: i32) -> (i32, i32) {
    %c0_i32 = arith.constant 0 : i32
    %c0_i32_0 = arith.constant 0 : i32
    %c0_i32_1 = arith.constant 0 : i32
    return %c0_i32, %c0_i32_0 : i32, i32
  }
  func.func @transform_2(%arg0: i32) -> (i32, i32) {
    %c0_i32 = arith.constant 0 : i32
    %c0_i32_0 = arith.constant 0 : i32
    %c0_i32_1 = arith.constant 0 : i32
    return %c0_i32, %c0_i32_0 : i32, i32
  }
  func.func @transform_3(%arg0: i32) -> (i32, i32, i32) {
    %c0_i32 = arith.constant 0 : i32
    %c0_i32_0 = arith.constant 0 : i32
    %c0_i32_1 = arith.constant 0 : i32
    return %arg0, %c0_i32, %c0_i32_0 : i32, i32, i32
  }
}

</mosaic_0001>

<llo_original>
// kernel: tpu_custom_call.1
$region0: #{tpu_custom_call.1}
  #allocation0 [shape = 'u32[]', space=smem, size = 0x4, offset = 0x4, fixed_abs, tag = 'smem constant byte address 0x4 - core index']
  #allocation1 [shape = 'u32[72,128]{1,0:T(1,128)}', space=vmem, size = 0x9000, scoped, tag = 'internal scratch']
  %s0 = inlined_call_operand.hbm [shape: f32[2,4,256], index: 0, kind: input, shape index: {}]
  %s1 = inlined_call_operand.vmem [shape: f32[4,2], index: 1, kind: input, shape index: {}]
  %s2 = inlined_call_operand.vmem [shape: f32[2,4], index: 2, kind: input, shape index: {}]
  %s3 = inlined_call_operand.hbm [shape: f32[2,4,256], index: 3, kind: output, shape index: {}]
  %s4 = sld [smem:[#allocation0]]
  $region26: #{tpu_custom_call.1} parent=0
    _
  %s6 = ssub.s32 1, %s4
  %s7 = scalar_select 0, %s6, %s4
  $region1: #{tpu_custom_call.1} parent=0
    #allocation2 [shape = 'u8[8192]{0}', space=vmem, size = 0x2000, scoped, tag = 'input window, operand 0, single buffered']
    #allocation3 [shape = 's32[1]{0}', space=sflag, size = 0x4, scoped, tag = 'scoped memory for tpu_custom_call.1']
    #allocation4 [shape = 's32[1]{0}', space=sflag, size = 0x4, scoped, tag = 'scoped memory for tpu_custom_call.1']
    #allocation5 [shape = 'u8[8192]{0}', space=vmem, size = 0x2000, scoped, tag = 'output window, operand 0, single buffered']
    %8 = vsyncpa [#allocation3], 0
    %9 = vsyncpa [#allocation4], 0
    // Predicated region
    $region2: #{tpu_custom_call.1} parent=1 // pred_check
      _
    $region3: #{tpu_custom_call.1} parent=1 // pred_check_branch
      %11 = sbr.rel (0) target = $region5
    $region4: #{tpu_custom_call.1} parent=1 // pred_region
      %13 = vsyncadd [#allocation3], 0
      %s14 = sshll.u32 %s0, 4
      %s15 = int_to_ptr.hbm [resolvable:$true] %s14
      %s16 = sshll.u32 [#allocation2], 4
      %s17 = int_to_ptr.vmem [resolvable:$true] %s16
      %22 = dma.hbm_to_vmem [thread:$0]  %s15, 256, %s17, [#allocation3], 128, 128, 8
    $region5: #{tpu_custom_call.1} parent=1 // pred_fallthru
      _
    // Predicated region
    $region6: #{tpu_custom_call.1} parent=1 // pred_check
      _
    $region7: #{tpu_custom_call.1} parent=1 // pred_check_branch
      %24 = sbr.rel (0) target = $region9
    $region8: #{tpu_custom_call.1} parent=1 // pred_region
      _
    $region9: #{tpu_custom_call.1} parent=1 // pred_fallthru
      _
    // Predicated region
    $region10: #{tpu_custom_call.1} parent=1 // pred_check
      _
    $region11: #{tpu_custom_call.1} parent=1 // pred_check_branch
      %26 = sbr.rel (0) target = $region13
    $region12: #{tpu_custom_call.1} parent=1 // pred_region
      _
    $region13: #{tpu_custom_call.1} parent=1 // pred_fallthru
      _
    // Predicated region
    $region14: #{tpu_custom_call.1} parent=1 // pred_check
      _
    $region15: #{tpu_custom_call.1} parent=1 // pred_check_branch
      %28 = sbr.rel (0) target = $region17
    $region16: #{tpu_custom_call.1} parent=1 // pred_region
      %30 = dma.done [#allocation3], 256
    $region17: #{tpu_custom_call.1} parent=1 // pred_fallthru
      _
    %v31 = vld [vmem:[#allocation2] sm:$0xff]
    %v32 = vld [vmem:[#allocation2 + $0x8] sm:$0xff]
    %35 = vst [vmem:[#allocation1] ss:$2 sm:$0xff] %v31
    %v36 = vld.sshfl [vmem:[#allocation1] sm:$0xff pattern:$0x75316420]
    %v37 = vld.sshfl [vmem:[#allocation1 + $0x8] sm:$0xff pattern:$0x75316420]
    %s38 = scalar_lea.vmem [#allocation1], 16
    %39 = vst [vmem:[%s38] ss:$2 sm:$0xff] %v32
    %v40 = vld.sshfl [vmem:[#allocation1 + $0x10] sm:$0xff pattern:$0x75316420]
    %v41 = vld.sshfl [vmem:[#allocation1 + $0x18] sm:$0xff pattern:$0x75316420]
    %vm46 = vcmask 1043456
    %v47 = vsel %vm46, %v36, 0.0
    %v48 = vsel %vm46, %v37, 0.0
    %v49 = vadd.f32 %v47, %v48
    %50 = vadd.xlane.f32.xlu0 %v49
    %v51 = vpop.xlane.xlu0 %50
    %v52 = vsel %vm46, %v40, 0.0
    %v53 = vsel %vm46, %v41, 0.0
    %v54 = vadd.f32 %v52, %v53
    %55 = vadd.xlane.f32.xlu0 %v54
    %v56 = vpop.xlane.xlu0 %55
    %v57 = vmul.f32 %v51, 0.00390625
    %v58 = vmul.f32 %v56, 0.00390625
    %v59 = vld [vmem:[%s1] sm:$0xf]
    %v60 = vld [vmem:[%s2] sm:$0x3]
    %v61 = vmul.f32 %v57, %v59
    %v62 = vmul.f32 %v58, %v59
    %vm63 = vcmask 11264
    %v64 = vsel %vm63, %v61, 0.0
    %v65 = vrot.slane %v64, 4
    %v66 = vadd.f32 %v64, %v65
    %v67 = vrot.slane %v66, 2
    %v68 = vadd.f32 %v66, %v67
    %v69 = vrot.slane %v68, 1
    %v70 = vadd.f32 %v68, %v69
    %v71 = vsel %vm63, %v62, 0.0
    %v72 = vrot.slane %v71, 4
    %v73 = vadd.f32 %v71, %v72
    %v74 = vrot.slane %v73, 2
    %v75 = vadd.f32 %v73, %v74
    %v76 = vrot.slane %v75, 1
    %v77 = vadd.f32 %v75, %v76
    %v78 = vmax.f32 %v70, 0.0
    %v79 = vmax.f32 %v77, 0.0
    %v80 = vlaneseq
    %v81 = vshrl.u32 %v80, 7
    %83 = vset.pattern.permute.xlu0 %v81
    %84 = vperm.xlu0 %83, %v78
    %v85 = vpop.permute.xlu0 %84
    %v86 = vlaneseq
    %v87 = vshrl.u32 %v86, 7
    %89 = vset.pattern.permute.xlu0 %v87
    %90 = vperm.xlu0 %89, %v79
    %v91 = vpop.permute.xlu0 %90
    %v92 = vmul.f32 %v85, %v60
    %v93 = vmul.f32 %v91, %v60
    %vm94 = vcmask 25600
    %v95 = vsel %vm94, %v92, 0.0
    %v96 = vrot.slane %v95, 4
    %v97 = vadd.f32 %v95, %v96
    %v98 = vrot.slane %v97, 2
    %v99 = vadd.f32 %v97, %v98
    %v100 = vrot.slane %v99, 1
    %v101 = vadd.f32 %v99, %v100
    %v102 = vsel %vm94, %v93, 0.0
    %v103 = vrot.slane %v102, 4
    %v104 = vadd.f32 %v102, %v103
    %v105 = vrot.slane %v104, 2
    %v106 = vadd.f32 %v104, %v105
    %v107 = vrot.slane %v106, 1
    %v108 = vadd.f32 %v106, %v107
    %v109 = vxor.u32 %v101, 2147483648
    %v110 = vxor.u32 %v108, 2147483648
    %v111 = vmul.f32 %v109, 1.442695
    %v112 = vpow.pop %v111
    %v113 = vmul.f32 %v110, 1.442695
    %v114 = vpow.pop %v113
    %v115 = vadd.f32 %v112, 1.0
    %v116 = vadd.f32 %v114, 1.0
    %v117 = vrcp.pop %v115
    %v118 = vmul.f32 %v115, %v117
    %v119 = vsub.f32 1.0, %v118
    %v120 = vmul.f32 %v117, %v119
    %v121 = vadd.f32 %v117, %v120
    %vm122 = vweird.f32 %v115
    %vm123 = vweird.f32 %v117
    %vm124 = vmor %vm122, %vm123
    %v125 = vsel %vm124, %v117, %v121
    %v126 = vand.u32 2147483647, %v115
    %vm127 = vcmp.eq.f32.partialorder %v126, 8.507059e+37
    %v128 = vand.u32 %v115, 2147483648
    %v129 = vor.u32 1.1754944e-38, %v128
    %v130 = vsel %vm127, %v129, %v125
    %v131 = vmul.f32 1.0, %v130
    %v132 = vrcp.pop %v116
    %v133 = vmul.f32 %v116, %v132
    %v134 = vsub.f32 1.0, %v133
    %v135 = vmul.f32 %v132, %v134
    %v136 = vadd.f32 %v132, %v135
    %vm137 = vweird.f32 %v116
    %vm138 = vweird.f32 %v132
    %vm139 = vmor %vm137, %vm138
    %v140 = vsel %vm139, %v132, %v136
    %v141 = vand.u32 2147483647, %v116
    %vm142 = vcmp.eq.f32.partialorder %v141, 8.507059e+37
    %v143 = vand.u32 %v116, 2147483648
    %v144 = vor.u32 1.1754944e-38, %v143
    %v145 = vsel %vm142, %v144, %v140
    %v146 = vmul.f32 1.0, %v145
    %v147 = vlaneseq
    %v148 = vshrl.u32 %v147, 7
    %150 = vset.pattern.permute.xlu0 %v148
    %151 = vperm.xlu0 %150, %v131
    %v152 = vpop.permute.xlu0 %151
    %v153 = vlaneseq
    %v154 = vshrl.u32 %v153, 7
    %156 = vset.pattern.permute.xlu0 %v154
    %157 = vperm.xlu0 %156, %v146
    %v158 = vpop.permute.xlu0 %157
    %v162 = vunpack.c.l.s4 839922192
    %v163 = vunpack.c.0.s8 %v162
    %v164 = vperm.slane %v152, %v163
    %v166 = vunpack.c.l.s4 839922192
    %v167 = vunpack.c.0.s8 %v166
    %v168 = vperm.slane %v158, %v167
    %v171 = vmul.f32 %v31, %v164
    %v172 = vmul.f32 %v32, %v168
    %173 = vst [vmem:[#allocation5] sm:$0xff] %v171
    %174 = vst [vmem:[#allocation5 + $0x8] sm:$0xff] %v172
    // Predicated region
    $region18: #{tpu_custom_call.1} parent=1 // pred_check
      _
    $region19: #{tpu_custom_call.1} parent=1 // pred_check_branch
      %176 = sbr.rel (0) target = $region21
    $region20: #{tpu_custom_call.1} parent=1 // pred_region
      %178 = vsyncadd [#allocation4], 0
      %s179 = sshll.u32 [#allocation5], 4
      %s180 = int_to_ptr.vmem [resolvable:$true] %s179
      %s181 = sshll.u32 %s3, 4
      %s182 = int_to_ptr.hbm [resolvable:$true] %s181
      %187 = dma.vmem_to_hbm [thread:$0]  %s180, 256, %s182, [#allocation4], 128, 128, 8
    $region21: #{tpu_custom_call.1} parent=1 // pred_fallthru
      _
    // Predicated region
    $region22: #{tpu_custom_call.1} parent=1 // pred_check
      _
    $region23: #{tpu_custom_call.1} parent=1 // pred_check_branch
      %189 = sbr.rel (0) target = $region25
    $region24: #{tpu_custom_call.1} parent=1 // pred_region
      %191 = dma.done [#allocation4], 256
    $region25: #{tpu_custom_call.1} parent=1 // pred_fallthru
      _
    %192 = vsyncpa [#allocation3], 1
    %193 = vsyncpa [#allocation4], 1

</llo_original>
